<compile_context>
chip_gen: v7x
topology: tpu7x:2x2x1
jax: 0.10.0
libtpu: 0.0.40
codegen_flags: <defaults>
</compile_context>

<pallas_src>
import functools

import jax
import jax.numpy as jnp
from jax.experimental import pallas as pl
from jax.experimental.pallas import tpu as pltpu

N_ACTIONS = 18          # input features
N_STATES = 18           # output features
H1 = 256
H2 = 128


def _round_up(n, m):
    return ((n + m - 1) // m) * m


def _net_kernel(x_ref, w1_ref, b1_ref, w2_ref, b2_ref, w3_ref, b3_ref, out_ref):
    # Cast x to the matmul operand dtype in-kernel (cheap VPU op, hidden under MXU).
    x = x_ref[...].astype(w1_ref.dtype)
    # fc1 + ReLU  (MXU dot, f32 accumulation; bias add / ReLU in f32)
    h1 = jnp.dot(x, w1_ref[...], preferred_element_type=jnp.float32) + b1_ref[...]
    h1 = jnp.maximum(h1, 0.0).astype(w2_ref.dtype)   # narrow only the matmul operand
    # hide1 + ReLU
    h2 = jnp.dot(h1, w2_ref[...], preferred_element_type=jnp.float32) + b2_ref[...]
    h2 = jnp.maximum(h2, 0.0).astype(w3_ref.dtype)
    # out (real 18-wide output; masked narrow store is cheap)
    y = jnp.dot(h2, w3_ref[...], preferred_element_type=jnp.float32) + b3_ref[...]
    out_ref[...] = y.astype(out_ref.dtype)


def prepare_params(params, compute_dtype=jnp.float32):
    """One-time parameter preparation (hoisted out of the forward path):
    transpose PyTorch (out, in) weights to (in, out) and optionally cast the
    matmul operands to bf16 (recommended on v5e/v6e/v7x alike — the MXU takes
    bf16 natively on all of them).  Biases stay f32 so bias-add/ReLU happen in
    f32 inside the kernel."""
    w1 = jnp.asarray(params["fc1_w"]).T.astype(compute_dtype)      # (18, 256)
    w2 = jnp.asarray(params["hide1_w"]).T.astype(compute_dtype)    # (256, 128)
    w3 = jnp.asarray(params["out_w"]).T.astype(compute_dtype)      # (128, 18)
    b1 = jnp.asarray(params["fc1_b"], jnp.float32).reshape(1, H1)
    b2 = jnp.asarray(params["hide1_b"], jnp.float32).reshape(1, H2)
    b3 = jnp.asarray(params["out_b"], jnp.float32).reshape(1, N_STATES)
    return {"w1": w1, "b1": b1, "w2": w2, "b2": b2, "w3": w3, "b3": b3}


@functools.partial(jax.jit, static_argnames=("block_rows",))
def net_forward(x, prep, *, block_rows=2048):
    """x: (B, 18) float32; prep: output of prepare_params. Returns (B, 18) float32."""
    B = x.shape[0]
    compute_dtype = prep["w1"].dtype
    w_itemsize = jnp.dtype(compute_dtype).itemsize

    # Batch tile: as large as sensible (fewer ~0.35 us grid steps), but split
    # into >=2 steps when the batch is big so v7x's 2 TensorCores share it.
    tm = _round_up(B, 8)
    if B >= 1024:
        tm = _round_up((B + 1) // 2, 8)
    tm = min(tm, block_rows)
    grid = (pl.cdiv(B, tm),)   # ragged last block handled by Pallas (masked store)

    cost = pl.CostEstimate(
        flops=2 * B * (N_ACTIONS * H1 + H1 * H2 + H2 * N_STATES),
        transcendentals=0,
        bytes_accessed=(
            B * N_ACTIONS * x.dtype.itemsize                        # x read
            + B * N_STATES * 4                                      # y write (f32)
            + (N_ACTIONS * H1 + H1 * H2 + H2 * N_STATES) * w_itemsize  # weights
            + (H1 + H2 + N_STATES) * 4                              # biases
        ),
    )

    out = pl.pallas_call(
        _net_kernel,
        out_shape=jax.ShapeDtypeStruct((B, N_STATES), jnp.float32),
        grid=grid,
        in_specs=[
            pl.BlockSpec((tm, N_ACTIONS), lambda i: (i, 0)),   # x: tiled over batch
            pl.BlockSpec((N_ACTIONS, H1), lambda i: (0, 0)),   # weights/biases:
            pl.BlockSpec((1, H1), lambda i: (0, 0)),           # constant block index ->
            pl.BlockSpec((H1, H2), lambda i: (0, 0)),          # VMEM-resident, not
            pl.BlockSpec((1, H2), lambda i: (0, 0)),           # re-DMA'd per grid step
            pl.BlockSpec((H2, N_STATES), lambda i: (0, 0)),
            pl.BlockSpec((1, N_STATES), lambda i: (0, 0)),
        ],
        out_specs=pl.BlockSpec((tm, N_STATES), lambda i: (i, 0)),
        compiler_params=pltpu.CompilerParams(
            dimension_semantics=("parallel",),   # batch axis shardable across TCs (v7x)
        ),
        cost_estimate=cost,
    )(x, prep["w1"], prep["b1"], prep["w2"], prep["b2"], prep["w3"], prep["b3"])

    return out


def init_params(key):
    """Deterministic init mirroring the PyTorch module's shapes (PyTorch layout)."""
    k1, k2, k3, k4, k5, k6 = jax.random.split(key, 6)
    return {
        "fc1_w": 0.1 * jax.random.normal(k1, (H1, N_ACTIONS), jnp.float32),
        "fc1_b": 0.01 * jax.random.uniform(k2, (H1,), jnp.float32, -1.0, 1.0),
        "hide1_w": 0.1 * jax.random.normal(k3, (H2, H1), jnp.float32),
        "hide1_b": 0.01 * jax.random.uniform(k4, (H2,), jnp.float32, -1.0, 1.0),
        "out_w": 0.1 * jax.random.normal(k5, (N_STATES, H2), jnp.float32),
        "out_b": 0.01 * jax.random.uniform(k6, (N_STATES,), jnp.float32, -1.0, 1.0),
    }


def net_forward_ref(x, params):
    h1 = jnp.maximum(x @ params["fc1_w"].T + params["fc1_b"], 0.0)
    h2 = jnp.maximum(h1 @ params["hide1_w"].T + params["hide1_b"], 0.0)
    return h2 @ params["out_w"].T + params["out_b"]


if __name__ == "__main__":
    key = jax.random.PRNGKey(0)
    kx, kp, kx2 = jax.random.split(key, 3)
    params = init_params(kp)

    # Small aligned batch, f32 operands (exact-ish vs reference).
    B = 8
    x = jax.random.normal(kx, (B, N_ACTIONS), jnp.float32)
    ref = net_forward_ref(x, params)
    prep_f32 = prepare_params(params, jnp.float32)
    out = jax.block_until_ready(net_forward(x, prep_f32))
    assert out.shape == (B, N_STATES)
    assert jnp.allclose(out, ref, atol=1e-4, rtol=1e-4), "f32 mismatch vs reference"

    # bf16 matmul-operand path (recommended on v5e/v6e/v7x); f32 accumulate/bias/ReLU.
    prep_bf16 = prepare_params(params, jnp.bfloat16)
    out_bf16 = jax.block_until_ready(net_forward(x, prep_bf16))
    assert out_bf16.shape == (B, N_STATES)
    assert jnp.allclose(out_bf16, ref, atol=5e-2, rtol=5e-2), "bf16 mismatch vs reference"

    # Ragged batch (not a multiple of 8): exercises Pallas' masked tail block.
    B2 = 20
    x2 = jax.random.normal(kx2, (B2, N_ACTIONS), jnp.float32)
    ref2 = net_forward_ref(x2, params)
    out2 = jax.block_until_ready(net_forward(x2, prep_f32))
    assert out2.shape == (B2, N_STATES)
    assert jnp.allclose(out2, ref2, atol=1e-4, rtol=1e-4), "ragged-batch mismatch"

    print("KERNEL_OK")
</pallas_src>

<mosaic_0001>
module attributes {stable_mosaic.version = 11 : i64} {
  func.func @_net_kernel(%arg0: i32, %arg1: memref<8x18xf32, #tpu.memory_space<vmem>>, %arg2: memref<18x256xf32, #tpu.memory_space<vmem>>, %arg3: memref<1x256xf32, #tpu.memory_space<vmem>>, %arg4: memref<256x128xf32, #tpu.memory_space<vmem>>, %arg5: memref<1x128xf32, #tpu.memory_space<vmem>>, %arg6: memref<128x18xf32, #tpu.memory_space<vmem>>, %arg7: memref<1x18xf32, #tpu.memory_space<vmem>>, %arg8: memref<8x18xf32, #tpu.memory_space<vmem>>) attributes {dimension_semantics = [#tpu.dimension_semantics<parallel>], iteration_bounds = array<i64: 1>, scalar_prefetch = 0 : i64, scratch_operands = 0 : i64, tpu.core_type = #tpu.core_type<tc>, window_params = [{transform_indices = @transform_0, window_bounds = array<i64: 8, 18>}, {pipeline_mode = #tpu.pipeline_mode<synchronous>, transform_indices = @transform_1, window_bounds = array<i64: 18, 256>}, {pipeline_mode = #tpu.pipeline_mode<synchronous>, transform_indices = @transform_2, window_bounds = array<i64: 1, 256>}, {pipeline_mode = #tpu.pipeline_mode<synchronous>, transform_indices = @transform_3, window_bounds = array<i64: 256, 128>}, {pipeline_mode = #tpu.pipeline_mode<synchronous>, transform_indices = @transform_4, window_bounds = array<i64: 1, 128>}, {pipeline_mode = #tpu.pipeline_mode<synchronous>, transform_indices = @transform_5, window_bounds = array<i64: 128, 18>}, {pipeline_mode = #tpu.pipeline_mode<synchronous>, transform_indices = @transform_6, window_bounds = array<i64: 1, 18>}, {transform_indices = @transform_7, window_bounds = array<i64: 8, 18>}]} {
    %c0 = arith.constant 0 : index
    %c0_0 = arith.constant 0 : index
    %0 = vector.load %arg1[%c0, %c0_0] : memref<8x18xf32, #tpu.memory_space<vmem>>, vector<8x18xf32>
    %c0_1 = arith.constant 0 : index
    %c0_2 = arith.constant 0 : index
    %1 = vector.load %arg2[%c0_1, %c0_2] : memref<18x256xf32, #tpu.memory_space<vmem>>, vector<18x256xf32>
    %cst = arith.constant dense<0.000000e+00> : vector<8x256xf32>
    %2 = tpu.matmul %0, %1, %cst {dimension_numbers = #tpu.dot_dimension_numbers<[1], [0], [0], [1], [0, 0, 1, 1], [], []>} : vector<8x18xf32>, vector<18x256xf32>, vector<8x256xf32> -> vector<8x256xf32>
    %c0_3 = arith.constant 0 : index
    %c0_4 = arith.constant 0 : index
    %3 = vector.load %arg3[%c0_3, %c0_4] : memref<1x256xf32, #tpu.memory_space<vmem>>, vector<1x256xf32>
    %4 = vector.broadcast %3 : vector<1x256xf32> to vector<8x256xf32>
    %5 = arith.addf %2, %4 : vector<8x256xf32>
    %cst_5 = arith.constant 0.000000e+00 : f32
    %6 = vector.broadcast %cst_5 : f32 to vector<8x256xf32>
    %7 = arith.maximumf %5, %6 : vector<8x256xf32>
    %c0_6 = arith.constant 0 : index
    %c0_7 = arith.constant 0 : index
    %8 = vector.load %arg4[%c0_6, %c0_7] : memref<256x128xf32, #tpu.memory_space<vmem>>, vector<256x128xf32>
    %cst_8 = arith.constant dense<0.000000e+00> : vector<8x128xf32>
    %9 = tpu.matmul %7, %8, %cst_8 {dimension_numbers = #tpu.dot_dimension_numbers<[1], [0], [0], [1], [0, 0, 1, 1], [], []>} : vector<8x256xf32>, vector<256x128xf32>, vector<8x128xf32> -> vector<8x128xf32>
    %c0_9 = arith.constant 0 : index
    %c0_10 = arith.constant 0 : index
    %10 = vector.load %arg5[%c0_9, %c0_10] : memref<1x128xf32, #tpu.memory_space<vmem>>, vector<1x128xf32>
    %11 = vector.broadcast %10 : vector<1x128xf32> to vector<8x128xf32>
    %12 = arith.addf %9, %11 : vector<8x128xf32>
    %cst_11 = arith.constant 0.000000e+00 : f32
    %13 = vector.broadcast %cst_11 : f32 to vector<8x128xf32>
    %14 = arith.maximumf %12, %13 : vector<8x128xf32>
    %c0_12 = arith.constant 0 : index
    %c0_13 = arith.constant 0 : index
    %15 = vector.load %arg6[%c0_12, %c0_13] : memref<128x18xf32, #tpu.memory_space<vmem>>, vector<128x18xf32>
    %cst_14 = arith.constant dense<0.000000e+00> : vector<8x18xf32>
    %16 = tpu.matmul %14, %15, %cst_14 {dimension_numbers = #tpu.dot_dimension_numbers<[1], [0], [0], [1], [0, 0, 1, 1], [], []>} : vector<8x128xf32>, vector<128x18xf32>, vector<8x18xf32> -> vector<8x18xf32>
    %c0_15 = arith.constant 0 : index
    %c0_16 = arith.constant 0 : index
    %17 = vector.load %arg7[%c0_15, %c0_16] : memref<1x18xf32, #tpu.memory_space<vmem>>, vector<1x18xf32>
    %18 = vector.broadcast %17 : vector<1x18xf32> to vector<8x18xf32>
    %19 = arith.addf %16, %18 : vector<8x18xf32>
    %c0_17 = arith.constant 0 : index
    %c0_18 = arith.constant 0 : index
    %20 = vector.load %arg8[%c0_17, %c0_18] : memref<8x18xf32, #tpu.memory_space<vmem>>, vector<8x18xf32>
    tpu.vector_store %arg8[%c0_17, %c0_18], %19 {strides = array<i32>} : memref<8x18xf32, #tpu.memory_space<vmem>>, vector<8x18xf32>,
    return
  }
  func.func @transform_0(%arg0: i32) -> (i32, i32) {
    %c0_i32 = arith.constant 0 : i32
    %c0_i32_0 = arith.constant 0 : i32
    return %arg0, %c0_i32 : i32, i32
  }
  func.func @transform_1(%arg0: i32) -> (i32, i32) {
    %c0_i32 = arith.constant 0 : i32
    %c0_i32_0 = arith.constant 0 : i32
    %c0_i32_1 = arith.constant 0 : i32
    return %c0_i32, %c0_i32_0 : i32, i32
  }
  func.func @transform_2(%arg0: i32) -> (i32, i32) {
    %c0_i32 = arith.constant 0 : i32
    %c0_i32_0 = arith.constant 0 : i32
    %c0_i32_1 = arith.constant 0 : i32
    return %c0_i32, %c0_i32_0 : i32, i32
  }
  func.func @transform_3(%arg0: i32) -> (i32, i32) {
    %c0_i32 = arith.constant 0 : i32
    %c0_i32_0 = arith.constant 0 : i32
    %c0_i32_1 = arith.constant 0 : i32
    return %c0_i32, %c0_i32_0 : i32, i32
  }
  func.func @transform_4(%arg0: i32) -> (i32, i32) {
    %c0_i32 = arith.constant 0 : i32
    %c0_i32_0 = arith.constant 0 : i32
    %c0_i32_1 = arith.constant 0 : i32
    return %c0_i32, %c0_i32_0 : i32, i32
  }
  func.func @transform_5(%arg0: i32) -> (i32, i32) {
    %c0_i32 = arith.constant 0 : i32
    %c0_i32_0 = arith.constant 0 : i32
    %c0_i32_1 = arith.constant 0 : i32
    return %c0_i32, %c0_i32_0 : i32, i32
  }
  func.func @transform_6(%arg0: i32) -> (i32, i32) {
    %c0_i32 = arith.constant 0 : i32
    %c0_i32_0 = arith.constant 0 : i32
    %c0_i32_1 = arith.constant 0 : i32
    return %c0_i32, %c0_i32_0 : i32, i32
  }
  func.func @transform_7(%arg0: i32) -> (i32, i32) {
    %c0_i32 = arith.constant 0 : i32
    %c0_i32_0 = arith.constant 0 : i32
    return %arg0, %c0_i32 : i32, i32
  }
}

</mosaic_0001>

<llo_original>
// kernel: net_forward.1
$region0: #{net_forward.1}
  #allocation0 [shape = 'u32[]', space=smem, size = 0x4, offset = 0x4, fixed_abs, tag = 'smem constant byte address 0x4 - core index']
  #allocation1 [shape = 'u32[144,128]{1,0:T(1,128)}', space=vmem, size = 0x12000, scoped, tag = 'internal scratch']
  %s0 = inlined_call_operand.vmem [shape: f32[8,18], index: 0, kind: input, shape index: {}]
  %s1 = inlined_call_operand.vmem [shape: f32[18,256], index: 1, kind: input, shape index: {}]
  %s2 = inlined_call_operand.vmem [shape: f32[1,256], index: 2, kind: input, shape index: {}]
  %s3 = inlined_call_operand.hbm [shape: f32[256,128], index: 3, kind: input, shape index: {}]
  %s4 = inlined_call_operand.vmem [shape: f32[1,128], index: 4, kind: input, shape index: {}]
  %s5 = inlined_call_operand.vmem [shape: f32[128,18], index: 5, kind: input, shape index: {}]
  %s6 = inlined_call_operand.vmem [shape: f32[1,18], index: 6, kind: input, shape index: {}]
  %s7 = inlined_call_operand.hbm [shape: f32[8,18], index: 7, kind: output, shape index: {}]
  %s8 = sld [smem:[#allocation0]]
  $region42: #{net_forward.1} parent=0
    _
  %s10 = ssub.s32 1, %s8
  %s11 = scalar_select 0, %s10, %s8
  $region1: #{net_forward.1} parent=0
    #allocation2 [shape = 'u8[131072]{0}', space=vmem, size = 0x20000, scoped, tag = 'input window, operand 3, single buffered']
    #allocation3 [shape = 's32[1]{0}', space=sflag, size = 0x4, scoped, tag = 'scoped memory for net_forward.1']
    #allocation4 [shape = 's32[1]{0}', space=sflag, size = 0x4, scoped, tag = 'scoped memory for net_forward.1']
    #allocation5 [shape = 'u8[4096]{0}', space=vmem, size = 0x1000, scoped, tag = 'output window, operand 0, single buffered']
    %12 = vsyncpa [#allocation3], 0
    %13 = vsyncpa [#allocation4], 0
    // Predicated region
    $region2: #{net_forward.1} parent=1 // pred_check
      _
    $region3: #{net_forward.1} parent=1 // pred_check_branch
      %15 = sbr.rel (0) target = $region5
    $region4: #{net_forward.1} parent=1 // pred_region
      _
    $region5: #{net_forward.1} parent=1 // pred_fallthru
      _
    // Predicated region
    $region6: #{net_forward.1} parent=1 // pred_check
      _
    $region7: #{net_forward.1} parent=1 // pred_check_branch
      %17 = sbr.rel (0) target = $region9
    $region8: #{net_forward.1} parent=1 // pred_region
      _
    $region9: #{net_forward.1} parent=1 // pred_fallthru
      _
    // Predicated region
    $region10: #{net_forward.1} parent=1 // pred_check
      _
    $region11: #{net_forward.1} parent=1 // pred_check_branch
      %19 = sbr.rel (0) target = $region13
    $region12: #{net_forward.1} parent=1 // pred_region
      _
    $region13: #{net_forward.1} parent=1 // pred_fallthru
      _
    // Predicated region
    $region14: #{net_forward.1} parent=1 // pred_check
      _
    $region15: #{net_forward.1} parent=1 // pred_check_branch
      %21 = sbr.rel (0) target = $region17
    $region16: #{net_forward.1} parent=1 // pred_region
      %s23 = ssub.s32 4096, 4096
      %24 = vsyncadd [#allocation3], %s23
      %s25 = sshll.u32 [#allocation2], 4
      %s26 = int_to_ptr.vmem [resolvable:$true] %s25
      %31 = dma.hbm_to_vmem [thread:$0]  %s3, 4096, %s26, [#allocation3], 128, 128, 8
    $region17: #{net_forward.1} parent=1 // pred_fallthru
      _
    // Predicated region
    $region18: #{net_forward.1} parent=1 // pred_check
      _
    $region19: #{net_forward.1} parent=1 // pred_check_branch
      %33 = sbr.rel (0) target = $region21
    $region20: #{net_forward.1} parent=1 // pred_region
      _
    $region21: #{net_forward.1} parent=1 // pred_fallthru
      _
    // Predicated region
    $region22: #{net_forward.1} parent=1 // pred_check
      _
    $region23: #{net_forward.1} parent=1 // pred_check_branch
      %35 = sbr.rel (0) target = $region25
    $region24: #{net_forward.1} parent=1 // pred_region
      _
    $region25: #{net_forward.1} parent=1 // pred_fallthru
      _
    // Predicated region
    $region26: #{net_forward.1} parent=1 // pred_check
      _
    $region27: #{net_forward.1} parent=1 // pred_check_branch
      %37 = sbr.rel (0) target = $region29
    $region28: #{net_forward.1} parent=1 // pred_region
      _
    $region29: #{net_forward.1} parent=1 // pred_fallthru
      _
    // Predicated region
    $region30: #{net_forward.1} parent=1 // pred_check
      _
    $region31: #{net_forward.1} parent=1 // pred_check_branch
      %39 = sbr.rel (0) target = $region33
    $region32: #{net_forward.1} parent=1 // pred_region
      %40 = dma.done [#allocation3], 4096
    $region33: #{net_forward.1} parent=1 // pred_fallthru
      _
    %v41 = vld [vmem:[%s0] sm:$0xff]
    %v42 = vld [vmem:[%s1] sm:$0xff]
    %v43 = vld [vmem:[%s1 + $0x8] sm:$0xff]
    %v44 = vld [vmem:[%s1 + $0x10] sm:$0xff]
    %v45 = vld [vmem:[%s1 + $0x18] sm:$0xff]
    %v46 = vld [vmem:[%s1 + $0x20] sm:$0x3]
    %v47 = vld [vmem:[%s1 + $0x28] sm:$0x3]
    %v48 = vld [vmem:[%s2] sm:$0x3]
    %v50 = vlaneseq
    %v51 = vshrl.u32 %v50, 7
    %v52 = vsub.s32 0, %v51
    %v53 = vrot.slane %v48, %v52
    %v54 = vlaneseq
    %v55 = vshrl.u32 %v54, 7
    %v56 = vsub.s32 1, %v55
    %v57 = vrot.slane %v48, %v56
    %vm60 = vcmask 146432
    %v62 = vsel %vm60, %v41, 0
    %vm64 = vcmask 1041408
    %v66 = vsel %vm64, %v46, 0
    %v69 = vsel %vm64, %v47, 0
    %71 = vmatprep.subr.mxu0 %v43
    %72 = vmatpush1.msra.mxu0 %v42
    %73 = vmatprep.subr.mxu0 %v45
    %74 = vmatpush1.msra.mxu0 %v44
    %75 = vmatprep.subr.mxu0 %v69
    %76 = vmatpush1.msra.mxu0 %v66
    %77 = vmatprep.subr.mxu0 0.0
    %78 = vmatpush1.msra.mxu0 0.0
    %79 = vmatprep.subr.mxu0 0.0
    %80 = vmatpush1.msra.mxu0 0.0
    %81 = vmatprep.subr.mxu0 0.0
    %82 = vmatpush1.msra.mxu0 0.0
    %83 = vmatprep.subr.mxu0 0.0
    %84 = vmatpush1.msra.mxu0 0.0
    %85 = vmatprep.subr.mxu0 0.0
    %86 = vmatpush1.msra.mxu0 0.0
    %87 = vmatprep.subr.mxu0 0.0
    %88 = vmatpush1.msra.mxu0 0.0
    %89 = vmatprep.subr.mxu0 0.0
    %90 = vmatpush1.msra.mxu0 0.0
    %91 = vmatprep.subr.mxu0 0.0
    %92 = vmatpush1.msra.mxu0 0.0
    %93 = vmatprep.subr.mxu0 0.0
    %94 = vmatpush1.msra.mxu0 0.0
    %95 = vmatprep.subr.mxu0 0.0
    %96 = vmatpush1.msra.mxu0 0.0
    %97 = vmatprep.subr.mxu0 0.0
    %98 = vmatpush1.msra.mxu0 0.0
    %99 = vmatprep.subr.mxu0 0.0
    %100 = vmatpush1.msra.mxu0 0.0
    %101 = vmatprep.subr.mxu0 0.0
    %102 = vmatpush1.msra.mxu0 0.0
    %103 = vmatprep.subr.mxu0 0.0
    %104 = vmatpush1.msra.mxu0 0.0
    %105 = vmatprep.subr.mxu0 0.0
    %106 = vmatpush1.msra.mxu0 0.0
    %107 = vmatprep.subr.mxu0 0.0
    %108 = vmatpush1.msra.mxu0 0.0
    %109 = vmatprep.subr.mxu0 0.0
    %110 = vmatpush1.msra.mxu0 0.0
    %111 = vmatprep.subr.mxu0 0.0
    %112 = vmatpush1.msra.mxu0 0.0
    %113 = vmatprep.subr.mxu0 0.0
    %114 = vmatpush1.msra.mxu0 0.0
    %115 = vmatprep.subr.mxu0 0.0
    %116 = vmatpush1.msra.mxu0 0.0
    %117 = vmatprep.subr.mxu0 0.0
    %118 = vmatpush1.msra.mxu0 0.0
    %119 = vmatprep.subr.mxu0 0.0
    %120 = vmatpush1.msra.mxu0 0.0
    %121 = vmatprep.subr.mxu0 0.0
    %122 = vmatpush1.msra.mxu0 0.0
    %123 = vmatprep.subr.mxu0 0.0
    %124 = vmatpush1.msra.mxu0 0.0
    %125 = vmatprep.subr.mxu0 0.0
    %126 = vmatpush1.msra.mxu0 0.0
    %127 = vmatprep.subr.mxu0 0.0
    %128 = vmatpush1.msra.mxu0 0.0
    %129 = vmatprep.subr.mxu0 0.0
    %130 = vmatpush1.msra.mxu0 0.0
    %131 = vmatprep.subr.mxu0 0.0
    %132 = vmatpush1.msra.mxu0 0.0
    %133 = vmatprep.subr.mxu0 0.0
    %134 = vmatpush1.msra.mxu0 0.0
    %135 = vmatprep.mubr.f32.mxu0 0.0
    %136 = vmatmul.mubr.f32.gmra.mrb[0].mxu0 %v62
    %v137 = vpop.f32.mrb[0].mxu0
    %v138 = vadd.f32 %v53, %v137
    %v139 = vpop.f32.mrb[0].mxu0
    %v140 = vadd.f32 %v57, %v139
    %141 = vdwg.mxu0
    %v142 = vmax.f32 %v138, 0.0
    %v143 = vmax.f32 %v140, 0.0
    %v144 = vld [vmem:[#allocation2] sm:$0xff]
    %v145 = vld [vmem:[#allocation2 + $0x8] sm:$0xff]
    %v146 = vld [vmem:[#allocation2 + $0x10] sm:$0xff]
    %v147 = vld [vmem:[#allocation2 + $0x18] sm:$0xff]
    %v148 = vld [vmem:[#allocation2 + $0x20] sm:$0xff]
    %v149 = vld [vmem:[#allocation2 + $0x28] sm:$0xff]
    %v150 = vld [vmem:[#allocation2 + $0x30] sm:$0xff]
    %v151 = vld [vmem:[#allocation2 + $0x38] sm:$0xff]
    %v152 = vld [vmem:[#allocation2 + $0x40] sm:$0xff]
    %v153 = vld [vmem:[#allocation2 + $0x48] sm:$0xff]
    %v154 = vld [vmem:[#allocation2 + $0x50] sm:$0xff]
    %v155 = vld [vmem:[#allocation2 + $0x58] sm:$0xff]
    %v156 = vld [vmem:[#allocation2 + $0x60] sm:$0xff]
    %v157 = vld [vmem:[#allocation2 + $0x68] sm:$0xff]
    %v158 = vld [vmem:[#allocation2 + $0x70] sm:$0xff]
    %v159 = vld [vmem:[#allocation2 + $0x78] sm:$0xff]
    %v160 = vld [vmem:[#allocation2 + $0x80] sm:$0xff]
    %v161 = vld [vmem:[#allocation2 + $0x88] sm:$0xff]
    %v162 = vld [vmem:[#allocation2 + $0x90] sm:$0xff]
    %v163 = vld [vmem:[#allocation2 + $0x98] sm:$0xff]
    %v164 = vld [vmem:[#allocation2 + $0xa0] sm:$0xff]
    %v165 = vld [vmem:[#allocation2 + $0xa8] sm:$0xff]
    %v166 = vld [vmem:[#allocation2 + $0xb0] sm:$0xff]
    %v167 = vld [vmem:[#allocation2 + $0xb8] sm:$0xff]
    %v168 = vld [vmem:[#allocation2 + $0xc0] sm:$0xff]
    %v169 = vld [vmem:[#allocation2 + $0xc8] sm:$0xff]
    %v170 = vld [vmem:[#allocation2 + $0xd0] sm:$0xff]
    %v171 = vld [vmem:[#allocation2 + $0xd8] sm:$0xff]
    %v172 = vld [vmem:[#allocation2 + $0xe0] sm:$0xff]
    %v173 = vld [vmem:[#allocation2 + $0xe8] sm:$0xff]
    %v174 = vld [vmem:[#allocation2 + $0xf0] sm:$0xff]
    %v175 = vld [vmem:[#allocation2 + $0xf8] sm:$0xff]
    %v176 = vld [vmem:[%s4] sm:$0x1]
    %v178 = vlaneseq
    %v179 = vshrl.u32 %v178, 7
    %v180 = vsub.s32 0, %v179
    %v181 = vrot.slane %v176, %v180
    %183 = vmatprep.subr.mxu0 0.0
    %184 = vmatpush1.msra.mxu0 %v144
    %185 = vmatprep.subr.mxu0 0.0
    %186 = vmatpush1.msra.mxu0 %v145
    %187 = vmatprep.subr.mxu0 0.0
    %188 = vmatpush1.msra.mxu0 %v146
    %189 = vmatprep.subr.mxu0 0.0
    %190 = vmatpush1.msra.mxu0 %v147
    %191 = vmatprep.subr.mxu0 0.0
    %192 = vmatpush1.msra.mxu0 %v148
    %193 = vmatprep.subr.mxu0 0.0
    %194 = vmatpush1.msra.mxu0 %v149
    %195 = vmatprep.subr.mxu0 0.0
    %196 = vmatpush1.msra.mxu0 %v150
    %197 = vmatprep.subr.mxu0 0.0
    %198 = vmatpush1.msra.mxu0 %v151
    %199 = vmatprep.subr.mxu0 0.0
    %200 = vmatpush1.msra.mxu0 %v152
    %201 = vmatprep.subr.mxu0 0.0
    %202 = vmatpush1.msra.mxu0 %v153
    %203 = vmatprep.subr.mxu0 0.0
    %204 = vmatpush1.msra.mxu0 %v154
    %205 = vmatprep.subr.mxu0 0.0
    %206 = vmatpush1.msra.mxu0 %v155
    %207 = vmatprep.subr.mxu0 0.0
    %208 = vmatpush1.msra.mxu0 %v156
    %209 = vmatprep.subr.mxu0 0.0
    %210 = vmatpush1.msra.mxu0 %v157
    %211 = vmatprep.subr.mxu0 0.0
    %212 = vmatpush1.msra.mxu0 %v158
    %213 = vmatprep.subr.mxu0 0.0
    %214 = vmatpush1.msra.mxu0 %v159
    %215 = vmatprep.subr.mxu0 0.0
    %216 = vmatpush1.msra.mxu0 %v160
    %217 = vmatprep.subr.mxu0 0.0
    %218 = vmatpush1.msra.mxu0 %v161
    %219 = vmatprep.subr.mxu0 0.0
    %220 = vmatpush1.msra.mxu0 %v162
    %221 = vmatprep.subr.mxu0 0.0
    %222 = vmatpush1.msra.mxu0 %v163
    %223 = vmatprep.subr.mxu0 0.0
    %224 = vmatpush1.msra.mxu0 %v164
    %225 = vmatprep.subr.mxu0 0.0
    %226 = vmatpush1.msra.mxu0 %v165
    %227 = vmatprep.subr.mxu0 0.0
    %228 = vmatpush1.msra.mxu0 %v166
    %229 = vmatprep.subr.mxu0 0.0
    %230 = vmatpush1.msra.mxu0 %v167
    %231 = vmatprep.subr.mxu0 0.0
    %232 = vmatpush1.msra.mxu0 %v168
    %233 = vmatprep.subr.mxu0 0.0
    %234 = vmatpush1.msra.mxu0 %v169
    %235 = vmatprep.subr.mxu0 0.0
    %236 = vmatpush1.msra.mxu0 %v170
    %237 = vmatprep.subr.mxu0 0.0
    %238 = vmatpush1.msra.mxu0 %v171
    %239 = vmatprep.subr.mxu0 0.0
    %240 = vmatpush1.msra.mxu0 %v172
    %241 = vmatprep.subr.mxu0 0.0
    %242 = vmatpush1.msra.mxu0 %v173
    %243 = vmatprep.subr.mxu0 0.0
    %244 = vmatpush1.msra.mxu0 %v174
    %245 = vmatprep.subr.mxu0 0.0
    %246 = vmatpush1.msra.mxu0 %v175
    %247 = vmatprep.mubr.f32.mxu0 %v143
    %248 = vmatmul.mubr.f32.gmra.mrb[0].mxu0 %v142
    %v249 = vpop.f32.mrb[0].mxu0
    %v250 = vadd.f32 %v181, %v249
    %v251 = vpop.f32.mrb[0].mxu0
    %252 = vdwg.mxu0
    %v253 = vmax.f32 %v250, 0.0
    %v254 = vld [vmem:[%s5] sm:$0xff]
    %v255 = vld [vmem:[%s5 + $0x8] sm:$0xff]
    %v256 = vld [vmem:[%s5 + $0x10] sm:$0xff]
    %v257 = vld [vmem:[%s5 + $0x18] sm:$0xff]
    %v258 = vld [vmem:[%s5 + $0x20] sm:$0xff]
    %v259 = vld [vmem:[%s5 + $0x28] sm:$0xff]
    %v260 = vld [vmem:[%s5 + $0x30] sm:$0xff]
    %v261 = vld [vmem:[%s5 + $0x38] sm:$0xff]
    %v262 = vld [vmem:[%s5 + $0x40] sm:$0xff]
    %v263 = vld [vmem:[%s5 + $0x48] sm:$0xff]
    %v264 = vld [vmem:[%s5 + $0x50] sm:$0xff]
    %v265 = vld [vmem:[%s5 + $0x58] sm:$0xff]
    %v266 = vld [vmem:[%s5 + $0x60] sm:$0xff]
    %v267 = vld [vmem:[%s5 + $0x68] sm:$0xff]
    %v268 = vld [vmem:[%s5 + $0x70] sm:$0xff]
    %v269 = vld [vmem:[%s5 + $0x78] sm:$0xff]
    %v270 = vld [vmem:[%s6] sm:$0x1]
    %v272 = vlaneseq
    %v273 = vshrl.u32 %v272, 7
    %v274 = vsub.s32 0, %v273
    %v275 = vrot.slane %v270, %v274
    %277 = vmatprep.subr.mxu0 0.0
    %278 = vmatpush1.msra.mxu0 %v254
    %279 = vmatprep.subr.mxu0 0.0
    %280 = vmatpush1.msra.mxu0 %v255
    %281 = vmatprep.subr.mxu0 0.0
    %282 = vmatpush1.msra.mxu0 %v256
    %283 = vmatprep.subr.mxu0 0.0
    %284 = vmatpush1.msra.mxu0 %v257
    %285 = vmatprep.subr.mxu0 0.0
    %286 = vmatpush1.msra.mxu0 %v258
    %287 = vmatprep.subr.mxu0 0.0
    %288 = vmatpush1.msra.mxu0 %v259
    %289 = vmatprep.subr.mxu0 0.0
    %290 = vmatpush1.msra.mxu0 %v260
    %291 = vmatprep.subr.mxu0 0.0
    %292 = vmatpush1.msra.mxu0 %v261
    %293 = vmatprep.subr.mxu0 0.0
    %294 = vmatpush1.msra.mxu0 %v262
    %295 = vmatprep.subr.mxu0 0.0
    %296 = vmatpush1.msra.mxu0 %v263
    %297 = vmatprep.subr.mxu0 0.0
    %298 = vmatpush1.msra.mxu0 %v264
    %299 = vmatprep.subr.mxu0 0.0
    %300 = vmatpush1.msra.mxu0 %v265
    %301 = vmatprep.subr.mxu0 0.0
    %302 = vmatpush1.msra.mxu0 %v266
    %303 = vmatprep.subr.mxu0 0.0
    %304 = vmatpush1.msra.mxu0 %v267
    %305 = vmatprep.subr.mxu0 0.0
    %306 = vmatpush1.msra.mxu0 %v268
    %307 = vmatprep.subr.mxu0 0.0
    %308 = vmatpush1.msra.mxu0 %v269
    %309 = vmatprep.subr.mxu0 0.0
    %310 = vmatpush1.msra.mxu0 0.0
    %311 = vmatprep.subr.mxu0 0.0
    %312 = vmatpush1.msra.mxu0 0.0
    %313 = vmatprep.subr.mxu0 0.0
    %314 = vmatpush1.msra.mxu0 0.0
    %315 = vmatprep.subr.mxu0 0.0
    %316 = vmatpush1.msra.mxu0 0.0
    %317 = vmatprep.subr.mxu0 0.0
    %318 = vmatpush1.msra.mxu0 0.0
    %319 = vmatprep.subr.mxu0 0.0
    %320 = vmatpush1.msra.mxu0 0.0
    %321 = vmatprep.subr.mxu0 0.0
    %322 = vmatpush1.msra.mxu0 0.0
    %323 = vmatprep.subr.mxu0 0.0
    %324 = vmatpush1.msra.mxu0 0.0
    %325 = vmatprep.subr.mxu0 0.0
    %326 = vmatpush1.msra.mxu0 0.0
    %327 = vmatprep.subr.mxu0 0.0
    %328 = vmatpush1.msra.mxu0 0.0
    %329 = vmatprep.subr.mxu0 0.0
    %330 = vmatpush1.msra.mxu0 0.0
    %331 = vmatprep.subr.mxu0 0.0
    %332 = vmatpush1.msra.mxu0 0.0
    %333 = vmatprep.subr.mxu0 0.0
    %334 = vmatpush1.msra.mxu0 0.0
    %335 = vmatprep.subr.mxu0 0.0
    %336 = vmatpush1.msra.mxu0 0.0
    %337 = vmatprep.subr.mxu0 0.0
    %338 = vmatpush1.msra.mxu0 0.0
    %339 = vmatprep.subr.mxu0 0.0
    %340 = vmatpush1.msra.mxu0 0.0
    %341 = vmatprep.mubr.f32.mxu0 0.0
    %342 = vmatmul.mubr.f32.gmra.mrb[0].mxu0 %v253
    %v343 = vpop.f32.mrb[0].mxu0
    %v344 = vadd.f32 %v275, %v343
    %v345 = vpop.f32.mrb[0].mxu0
    %346 = vdwg.mxu0
    %347 = vst.msk [vmem:[#allocation5] sm:$0xff] %vm60, %v344
    // Predicated region
    $region34: #{net_forward.1} parent=1 // pred_check
      _
    $region35: #{net_forward.1} parent=1 // pred_check_branch
      %349 = sbr.rel (0) target = $region37
    $region36: #{net_forward.1} parent=1 // pred_region
      %s351 = ssub.s32 128, 128
      %352 = vsyncadd [#allocation4], %s351
      %s354 = sshll.u32 [#allocation5], 4
      %s355 = int_to_ptr.vmem [resolvable:$true] %s354
      %357 = dma.vmem_to_hbm [thread:$0]  %s355, 128, %s7, [#allocation4]
    $region37: #{net_forward.1} parent=1 // pred_fallthru
      _
    // Predicated region
    $region38: #{net_forward.1} parent=1 // pred_check
      _
    $region39: #{net_forward.1} parent=1 // pred_check_branch
      %359 = sbr.rel (0) target = $region41
    $region40: #{net_forward.1} parent=1 // pred_region
      %360 = dma.done [#allocation4], 128
    $region41: #{net_forward.1} parent=1 // pred_fallthru
      _
    %361 = vsyncpa [#allocation3], 1
    %362 = vsyncpa [#allocation4], 1

</llo_original>
